<compile_context>
chip_gen: v7x
topology: tpu7x:2x2x1
jax: 0.10.0
libtpu: 0.0.40
codegen_flags: <defaults>
</compile_context>

<pallas_src>
import functools

import jax
import jax.numpy as jnp
from jax.experimental import pallas as pl
from jax.experimental.pallas import tpu as pltpu

NEG_SLOPE = 0.01     # nn.LeakyReLU() default
LANE = 128           # lane width: hidden / output dims are padded to this
ROW_ALIGN = 16       # bf16 sublane packing -> keep row offsets multiples of 16


def _round_up(x, m):
    return (x + m - 1) // m * m


def _leaky_relu(x):
    return jnp.where(x > 0, x, NEG_SLOPE * x)


def mlp_kernel(x_ref, w_ref, b_ref, o_ref, *, in_pad):
    """One (TB, in_pad) batch tile through the whole MLP.

    x_ref : (TB, in_pad)           bf16, zero-padded input rows/cols
    w_ref : (in_pad + 3*128, 128)  bf16 packed weight slab (biases 2..4 folded in)
    b_ref : (8, 128)               f32, row 0 = b1 with a 1.0 seeded at lane 127
    o_ref : (TB, 128)              lane-dense output (cols >= out_channels unused)
    """
    o2 = in_pad
    o3 = o2 + LANE
    o4 = o3 + LANE

    # Layer 1: explicit f32 bias add.  The bias row also puts 1.0 into lane 127,
    # seeding the constant-1 channel that carries the folded biases of layers 2..4.
    h = jnp.dot(x_ref[...], w_ref[0:o2, :], preferred_element_type=jnp.float32)
    h = _leaky_relu(h + b_ref[0:1, :])          # LeakyReLU(1) == 1 -> lane 127 stays 1

    # Layer 2: bias folded into row 127 of the weight block (identity at [127,127]).
    h = jnp.dot(h.astype(jnp.bfloat16), w_ref[o2:o3, :],
                preferred_element_type=jnp.float32)
    h = _leaky_relu(h)

    # Layer 3.
    h = jnp.dot(h.astype(jnp.bfloat16), w_ref[o3:o4, :],
                preferred_element_type=jnp.float32)
    h = _leaky_relu(h)

    # Layer 4 (no activation); bias folded the same way.
    h = jnp.dot(h.astype(jnp.bfloat16), w_ref[o4:o4 + LANE, :],
                preferred_element_type=jnp.float32)

    o_ref[...] = h.astype(o_ref.dtype)          # full 128-lane store; wrapper slices


def pack_params(params, *, in_pad):
    """Pack w1..w4 (+ folded b2..b4) into one bf16 slab and b1 into an f32 slab."""
    in_channels, n_hidden = params["w1"].shape
    out_channels = params["w4"].shape[1]
    # Lane 127 is reserved as the constant-1 channel.
    assert n_hidden <= LANE - 1 and out_channels <= LANE - 1, \
        "hidden/out must be <= 127 (lane 127 reserved for bias folding)"

    w_rows = in_pad + 3 * LANE
    w = jnp.zeros((w_rows, LANE), jnp.float32)

    # Layer 1 weights (bias added explicitly in-kernel).
    w = w.at[:in_channels, :n_hidden].set(params["w1"].astype(jnp.float32))

    # Layers 2/3: weights + bias in row 127 + identity to carry the const-1 lane.
    for li, (wn, bn) in enumerate((("w2", "b2"), ("w3", "b3"))):
        r = in_pad + li * LANE
        w = w.at[r:r + n_hidden, :n_hidden].set(params[wn].astype(jnp.float32))
        w = w.at[r + LANE - 1, :n_hidden].set(params[bn][0].astype(jnp.float32))
        w = w.at[r + LANE - 1, LANE - 1].set(1.0)

    # Layer 4: weights + bias in row 127 (no need to propagate the const-1 lane).
    r = in_pad + 2 * LANE
    w = w.at[r:r + n_hidden, :out_channels].set(params["w4"].astype(jnp.float32))
    w = w.at[r + LANE - 1, :out_channels].set(params["b4"][0].astype(jnp.float32))

    b = jnp.zeros((8, LANE), jnp.float32)
    b = b.at[0, :n_hidden].set(params["b1"][0].astype(jnp.float32))
    b = b.at[0, LANE - 1].set(1.0)              # seed the constant-1 channel

    return w.astype(jnp.bfloat16), b


def network_forward(x, params, *, batch_tile=1024, out_dtype=jnp.float32):
    """params = dict with w1..w4 of shape (in, out) and b1..b4 of shape (1, out)."""
    B, in_channels = x.shape
    out_channels = params["w4"].shape[1]

    in_pad = _round_up(in_channels, ROW_ALIGN)
    w_slab, b_slab = pack_params(params, in_pad=in_pad)

    # --- Batch tiling --------------------------------------------------------
    # Big tiles amortize per-step overhead; aim for >= 2 grid steps so the
    # "parallel" batch axis shards across both TensorCores on v7x.
    min_steps = 2
    b_al = _round_up(max(B, 1), ROW_ALIGN)
    tb = min(batch_tile, _round_up(pl.cdiv(b_al, min_steps), ROW_ALIGN))
    tb = max(tb, ROW_ALIGN)
    b_pad = _round_up(b_al, tb)
    grid = (b_pad // tb,)

    # Cast to bf16; skip the materialized zero-pad when already tile-aligned.
    if b_pad == B and in_pad == in_channels:
        x_in = x.astype(jnp.bfloat16)
    else:
        x_in = jnp.zeros((b_pad, in_pad), jnp.bfloat16)
        x_in = x_in.at[:B, :in_channels].set(x.astype(jnp.bfloat16))

    kernel = functools.partial(mlp_kernel, in_pad=in_pad)

    out = pl.pallas_call(
        kernel,
        out_shape=jax.ShapeDtypeStruct((b_pad, LANE), out_dtype),
        grid=grid,
        in_specs=[
            pl.BlockSpec((tb, in_pad), lambda i: (i, 0)),
            pl.BlockSpec(w_slab.shape, lambda i: (0, 0)),   # constant -> VMEM-resident
            pl.BlockSpec(b_slab.shape, lambda i: (0, 0)),   # constant -> VMEM-resident
        ],
        out_specs=pl.BlockSpec((tb, LANE), lambda i: (i, 0)),
        compiler_params=pltpu.CompilerParams(
            dimension_semantics=("parallel",)),              # batch sharded on v7x
    )(x_in, w_slab, b_slab)

    return out[:B, :out_channels]


def init_params(key, in_channels, out_channels, n_hidden):
    """Deterministic init mimicking nn.Linear's uniform(-1/sqrt(fan_in), ...)."""
    dims = [(in_channels, n_hidden),
            (n_hidden, n_hidden),
            (n_hidden, n_hidden),
            (n_hidden, out_channels)]
    params = {}
    keys = jax.random.split(key, 2 * len(dims))
    for i, (fan_in, fan_out) in enumerate(dims):
        bound = 1.0 / jnp.sqrt(jnp.float32(fan_in))
        w = jax.random.uniform(keys[2 * i], (fan_in, fan_out),
                               minval=-bound, maxval=bound, dtype=jnp.float32)
        b = jax.random.uniform(keys[2 * i + 1], (1, fan_out),
                               minval=-bound, maxval=bound, dtype=jnp.float32)
        params[f"w{i + 1}"] = w
        params[f"b{i + 1}"] = b
    return params


def reference_forward(x, params):
    h = x
    for i in range(1, 4):
        h = h @ params[f"w{i}"] + params[f"b{i}"]
        h = jnp.where(h > 0, h, NEG_SLOPE * h)
    return h @ params["w4"] + params["b4"]


if __name__ == "__main__":
    in_channels, out_channels, n_hidden = 4, 3, 32
    batch = 8

    key = jax.random.PRNGKey(0)
    kx, kp = jax.random.split(key)
    x = jax.random.normal(kx, (batch, in_channels), dtype=jnp.float32)
    params = init_params(kp, in_channels, out_channels, n_hidden)

    out = network_forward(x, params)
    out = jax.block_until_ready(out)

    ref = reference_forward(x, params)
    assert out.shape == (batch, out_channels)
    # bf16 matmul operands with f32 accumulation -> loosened tolerance.
    assert jnp.allclose(out, ref, atol=5e-2, rtol=5e-2), \
        f"max abs diff {jnp.max(jnp.abs(out - ref))}"

    print("KERNEL_OK")
</pallas_src>

<mosaic_0001>
module attributes {stable_mosaic.version = 11 : i64} {
  func.func @mlp_kernel(%arg0: i32, %arg1: memref<16x16xbf16, #tpu.memory_space<vmem>>, %arg2: memref<400x128xbf16, #tpu.memory_space<vmem>>, %arg3: memref<8x128xf32, #tpu.memory_space<vmem>>, %arg4: memref<16x128xf32, #tpu.memory_space<vmem>>) attributes {dimension_semantics = [#tpu.dimension_semantics<parallel>], iteration_bounds = array<i64: 1>, scalar_prefetch = 0 : i64, scratch_operands = 0 : i64, tpu.core_type = #tpu.core_type<tc>, window_params = [{transform_indices = @transform_0, window_bounds = array<i64: 16, 16>}, {pipeline_mode = #tpu.pipeline_mode<synchronous>, transform_indices = @transform_1, window_bounds = array<i64: 400, 128>}, {pipeline_mode = #tpu.pipeline_mode<synchronous>, transform_indices = @transform_2, window_bounds = array<i64: 8, 128>}, {transform_indices = @transform_3, window_bounds = array<i64: 16, 128>}]} {
    %c0 = arith.constant 0 : index
    %c0_0 = arith.constant 0 : index
    %0 = vector.load %arg1[%c0, %c0_0] : memref<16x16xbf16, #tpu.memory_space<vmem>>, vector<16x16xbf16>
    %c0_1 = arith.constant 0 : index
    %c0_2 = arith.constant 0 : index
    %1 = vector.load %arg2[%c0_1, %c0_2] : memref<400x128xbf16, #tpu.memory_space<vmem>>, vector<16x128xbf16>
    %cst = arith.constant dense<0.000000e+00> : vector<16x128xf32>
    %2 = tpu.matmul %0, %1, %cst {dimension_numbers = #tpu.dot_dimension_numbers<[1], [0], [0], [1], [0, 0, 1, 1], [], []>} : vector<16x16xbf16>, vector<16x128xbf16>, vector<16x128xf32> -> vector<16x128xf32>
    %c0_3 = arith.constant 0 : index
    %c0_4 = arith.constant 0 : index
    %3 = vector.load %arg3[%c0_3, %c0_4] : memref<8x128xf32, #tpu.memory_space<vmem>>, vector<1x128xf32>
    %4 = vector.broadcast %3 : vector<1x128xf32> to vector<16x128xf32>
    %5 = arith.addf %2, %4 : vector<16x128xf32>
    %cst_5 = arith.constant 0.000000e+00 : f32
    %6 = vector.broadcast %cst_5 : f32 to vector<16x128xf32>
    %7 = arith.cmpf ogt, %5, %6 : vector<16x128xf32>
    %cst_6 = arith.constant 0.00999999977 : f32
    %8 = vector.broadcast %cst_6 : f32 to vector<16x128xf32>
    %9 = arith.mulf %8, %5 : vector<16x128xf32>
    %10 = arith.select %7, %5, %9 : vector<16x128xi1>, vector<16x128xf32>
    %11 = arith.truncf %10 : vector<16x128xf32> to vector<16x128xbf16>
    %c16 = arith.constant 16 : index
    %c0_7 = arith.constant 0 : index
    %12 = vector.load %arg2[%c16, %c0_7] : memref<400x128xbf16, #tpu.memory_space<vmem>>, vector<128x128xbf16>
    %cst_8 = arith.constant dense<0.000000e+00> : vector<16x128xf32>
    %13 = tpu.matmul %11, %12, %cst_8 {dimension_numbers = #tpu.dot_dimension_numbers<[1], [0], [0], [1], [0, 0, 1, 1], [], []>} : vector<16x128xbf16>, vector<128x128xbf16>, vector<16x128xf32> -> vector<16x128xf32>
    %cst_9 = arith.constant 0.000000e+00 : f32
    %14 = vector.broadcast %cst_9 : f32 to vector<16x128xf32>
    %15 = arith.cmpf ogt, %13, %14 : vector<16x128xf32>
    %cst_10 = arith.constant 0.00999999977 : f32
    %16 = vector.broadcast %cst_10 : f32 to vector<16x128xf32>
    %17 = arith.mulf %16, %13 : vector<16x128xf32>
    %18 = arith.select %15, %13, %17 : vector<16x128xi1>, vector<16x128xf32>
    %19 = arith.truncf %18 : vector<16x128xf32> to vector<16x128xbf16>
    %c144 = arith.constant 144 : index
    %c0_11 = arith.constant 0 : index
    %20 = vector.load %arg2[%c144, %c0_11] : memref<400x128xbf16, #tpu.memory_space<vmem>>, vector<128x128xbf16>
    %cst_12 = arith.constant dense<0.000000e+00> : vector<16x128xf32>
    %21 = tpu.matmul %19, %20, %cst_12 {dimension_numbers = #tpu.dot_dimension_numbers<[1], [0], [0], [1], [0, 0, 1, 1], [], []>} : vector<16x128xbf16>, vector<128x128xbf16>, vector<16x128xf32> -> vector<16x128xf32>
    %cst_13 = arith.constant 0.000000e+00 : f32
    %22 = vector.broadcast %cst_13 : f32 to vector<16x128xf32>
    %23 = arith.cmpf ogt, %21, %22 : vector<16x128xf32>
    %cst_14 = arith.constant 0.00999999977 : f32
    %24 = vector.broadcast %cst_14 : f32 to vector<16x128xf32>
    %25 = arith.mulf %24, %21 : vector<16x128xf32>
    %26 = arith.select %23, %21, %25 : vector<16x128xi1>, vector<16x128xf32>
    %27 = arith.truncf %26 : vector<16x128xf32> to vector<16x128xbf16>
    %c272 = arith.constant 272 : index
    %c0_15 = arith.constant 0 : index
    %28 = vector.load %arg2[%c272, %c0_15] : memref<400x128xbf16, #tpu.memory_space<vmem>>, vector<128x128xbf16>
    %cst_16 = arith.constant dense<0.000000e+00> : vector<16x128xf32>
    %29 = tpu.matmul %27, %28, %cst_16 {dimension_numbers = #tpu.dot_dimension_numbers<[1], [0], [0], [1], [0, 0, 1, 1], [], []>} : vector<16x128xbf16>, vector<128x128xbf16>, vector<16x128xf32> -> vector<16x128xf32>
    %c0_17 = arith.constant 0 : index
    %c0_18 = arith.constant 0 : index
    %30 = vector.load %arg4[%c0_17, %c0_18] : memref<16x128xf32, #tpu.memory_space<vmem>>, vector<16x128xf32>
    tpu.vector_store %arg4[%c0_17, %c0_18], %29 {strides = array<i32>} : memref<16x128xf32, #tpu.memory_space<vmem>>, vector<16x128xf32>,
    return
  }
  func.func @transform_0(%arg0: i32) -> (i32, i32) {
    %c0_i32 = arith.constant 0 : i32
    %c0_i32_0 = arith.constant 0 : i32
    return %arg0, %c0_i32 : i32, i32
  }
  func.func @transform_1(%arg0: i32) -> (i32, i32) {
    %c0_i32 = arith.constant 0 : i32
    %c0_i32_0 = arith.constant 0 : i32
    %c0_i32_1 = arith.constant 0 : i32
    return %c0_i32, %c0_i32_0 : i32, i32
  }
  func.func @transform_2(%arg0: i32) -> (i32, i32) {
    %c0_i32 = arith.constant 0 : i32
    %c0_i32_0 = arith.constant 0 : i32
    %c0_i32_1 = arith.constant 0 : i32
    return %c0_i32, %c0_i32_0 : i32, i32
  }
  func.func @transform_3(%arg0: i32) -> (i32, i32) {
    %c0_i32 = arith.constant 0 : i32
    %c0_i32_0 = arith.constant 0 : i32
    return %arg0, %c0_i32 : i32, i32
  }
}

</mosaic_0001>

<llo_original>
// kernel: tpu_custom_call.1
$region0: #{tpu_custom_call.1}
  #allocation0 [shape = 'u32[]', space=smem, size = 0x4, offset = 0x4, fixed_abs, tag = 'smem constant byte address 0x4 - core index']
  #allocation1 [shape = 'u32[144,128]{1,0:T(1,128)}', space=vmem, size = 0x12000, scoped, tag = 'internal scratch']
  %s0 = inlined_call_operand.hbm [shape: bf16[16,16], index: 0, kind: input, shape index: {}]
  %s1 = inlined_call_operand.hbm [shape: bf16[400,128], index: 1, kind: input, shape index: {}]
  %s2 = inlined_call_operand.hbm [shape: f32[8,128], index: 2, kind: input, shape index: {}]
  %s3 = inlined_call_operand.hbm [shape: f32[16,128], index: 3, kind: output, shape index: {}]
  %s4 = sld [smem:[#allocation0]]
  $region34: #{tpu_custom_call.1} parent=0
    _
  %s6 = ssub.s32 1, %s4
  %s7 = scalar_select 0, %s6, %s4
  $region1: #{tpu_custom_call.1} parent=0
    #allocation2 [shape = 'u8[4096]{0}', space=vmem, size = 0x1000, scoped, tag = 'input window, operand 0, single buffered']
    #allocation3 [shape = 's32[1]{0}', space=sflag, size = 0x4, scoped, tag = 'scoped memory for tpu_custom_call.1']
    #allocation4 [shape = 's32[1]{0}', space=sflag, size = 0x4, scoped, tag = 'scoped memory for tpu_custom_call.1']
    #allocation5 [shape = 'u8[102400]{0}', space=vmem, size = 0x19000, scoped, tag = 'input window, operand 1, single buffered']
    #allocation6 [shape = 's32[1]{0}', space=sflag, size = 0x4, scoped, tag = 'scoped memory for tpu_custom_call.1']
    #allocation7 [shape = 'u8[4096]{0}', space=vmem, size = 0x1000, scoped, tag = 'input window, operand 2, single buffered']
    #allocation8 [shape = 'u8[8192]{0}', space=vmem, size = 0x2000, scoped, tag = 'output window, operand 0, single buffered']
    %8 = vsyncpa [#allocation3], 0
    %9 = vsyncpa [#allocation6], 0
    %10 = vsyncpa [#allocation4], 0
    // Predicated region
    $region2: #{tpu_custom_call.1} parent=1 // pred_check
      _
    $region3: #{tpu_custom_call.1} parent=1 // pred_check_branch
      %12 = sbr.rel (0) target = $region5
    $region4: #{tpu_custom_call.1} parent=1 // pred_region
      %s14 = ssub.s32 128, 128
      %15 = vsyncadd [#allocation3], %s14
      %s16 = sshll.u32 [#allocation2], 4
      %s17 = int_to_ptr.vmem [resolvable:$true] %s16
      %22 = dma.hbm_to_vmem [thread:$0]  %s0, 128, %s17, [#allocation3], 64, 64, 4
    $region5: #{tpu_custom_call.1} parent=1 // pred_fallthru
      _
    // Predicated region
    $region6: #{tpu_custom_call.1} parent=1 // pred_check
      _
    $region7: #{tpu_custom_call.1} parent=1 // pred_check_branch
      %24 = sbr.rel (0) target = $region9
    $region8: #{tpu_custom_call.1} parent=1 // pred_region
      %s26 = ssub.s32 3200, 3200
      %27 = vsyncadd [#allocation6], %s26
      %s28 = sshll.u32 [#allocation5], 4
      %s29 = int_to_ptr.vmem [resolvable:$true] %s28
      %34 = dma.hbm_to_vmem [thread:$0]  %s1, 3200, %s29, [#allocation6], 64, 64, 4
    $region9: #{tpu_custom_call.1} parent=1 // pred_fallthru
      _
    // Predicated region
    $region10: #{tpu_custom_call.1} parent=1 // pred_check
      _
    $region11: #{tpu_custom_call.1} parent=1 // pred_check_branch
      %36 = sbr.rel (0) target = $region13
    $region12: #{tpu_custom_call.1} parent=1 // pred_region
      %s38 = ssub.s32 128, 128
      %39 = vsyncadd [#allocation6], %s38
      %s41 = sshll.u32 [#allocation7], 4
      %s42 = int_to_ptr.vmem [resolvable:$true] %s41
      %44 = dma.hbm_to_vmem [thread:$0]  %s2, 128, %s42, [#allocation6]
    $region13: #{tpu_custom_call.1} parent=1 // pred_fallthru
      _
    // Predicated region
    $region14: #{tpu_custom_call.1} parent=1 // pred_check
      _
    $region15: #{tpu_custom_call.1} parent=1 // pred_check_branch
      %46 = sbr.rel (0) target = $region17
    $region16: #{tpu_custom_call.1} parent=1 // pred_region
      %47 = dma.done [#allocation3], 128
    $region17: #{tpu_custom_call.1} parent=1 // pred_fallthru
      _
    // Predicated region
    $region18: #{tpu_custom_call.1} parent=1 // pred_check
      _
    $region19: #{tpu_custom_call.1} parent=1 // pred_check_branch
      %49 = sbr.rel (0) target = $region21
    $region20: #{tpu_custom_call.1} parent=1 // pred_region
      %50 = dma.done [#allocation6], 3200
    $region21: #{tpu_custom_call.1} parent=1 // pred_fallthru
      _
    // Predicated region
    $region22: #{tpu_custom_call.1} parent=1 // pred_check
      _
    $region23: #{tpu_custom_call.1} parent=1 // pred_check_branch
      %52 = sbr.rel (0) target = $region25
    $region24: #{tpu_custom_call.1} parent=1 // pred_region
      %53 = dma.done [#allocation6], 128
    $region25: #{tpu_custom_call.1} parent=1 // pred_fallthru
      _
    %v55 = vld [vmem:[#allocation2] sm:$0xf]
    %v56 = vld [vmem:[#allocation2 + $0x4] sm:$0xf]
    %v57 = vld [vmem:[#allocation5] sm:$0xf]
    %v58 = vld [vmem:[#allocation5 + $0x4] sm:$0xf]
    %v59 = vld [vmem:[#allocation7] sm:$0x1]
    %v60 = vlaneseq
    %v61 = vshrl.u32 %v60, 7
    %v62 = vsub.s32 0, %v61
    %v63 = vrot.slane %v59, %v62
    %v66 = vunpack.c.l.b16 %v55
    %v67 = vunpack.c.l.b16 %v56
    %v68 = vpack.c.b16 %v67, %v66
    %v71 = vunpack.c.l.b16 %v57
    %v72 = vunpack.c.l.b16 %v58
    %v73 = vpack.c.b16 %v72, %v71
    %vm75 = vcmask 130048
    %v77 = vsel %vm75, %v68, 0
    %79 = vmatprep.subr.bf16.mxu0 0
    %80 = vmatpush1.bf16.msra.mxu0 %v73
    %81 = vmatprep.subr.bf16.mxu0 0
    %82 = vmatpush1.bf16.msra.mxu0 0
    %83 = vmatprep.subr.bf16.mxu0 0
    %84 = vmatpush1.bf16.msra.mxu0 0
    %85 = vmatprep.subr.bf16.mxu0 0
    %86 = vmatpush1.bf16.msra.mxu0 0
    %87 = vmatprep.subr.bf16.mxu0 0
    %88 = vmatpush1.bf16.msra.mxu0 0
    %89 = vmatprep.subr.bf16.mxu0 0
    %90 = vmatpush1.bf16.msra.mxu0 0
    %91 = vmatprep.subr.bf16.mxu0 0
    %92 = vmatpush1.bf16.msra.mxu0 0
    %93 = vmatprep.subr.bf16.mxu0 0
    %94 = vmatpush1.bf16.msra.mxu0 0
    %95 = vmatprep.subr.bf16.mxu0 0
    %96 = vmatpush1.bf16.msra.mxu0 0
    %97 = vmatprep.subr.bf16.mxu0 0
    %98 = vmatpush1.bf16.msra.mxu0 0
    %99 = vmatprep.subr.bf16.mxu0 0
    %100 = vmatpush1.bf16.msra.mxu0 0
    %101 = vmatprep.subr.bf16.mxu0 0
    %102 = vmatpush1.bf16.msra.mxu0 0
    %103 = vmatprep.subr.bf16.mxu0 0
    %104 = vmatpush1.bf16.msra.mxu0 0
    %105 = vmatprep.subr.bf16.mxu0 0
    %106 = vmatpush1.bf16.msra.mxu0 0
    %107 = vmatprep.subr.bf16.mxu0 0
    %108 = vmatpush1.bf16.msra.mxu0 0
    %109 = vmatprep.subr.bf16.mxu0 0
    %110 = vmatpush1.bf16.msra.mxu0 0
    %111 = vmatprep.mubr.bf16.mxu0 0
    %112 = vmatmul.mubr.bf16.gmra.mrb[0].mxu0 %v77
    %v113 = vpop.f32.mrb[0].mxu0
    %v114 = vadd.f32 %v63, %v113
    %v115 = vpop.f32.mrb[0].mxu0
    %v116 = vpop.f32.mrb[0].mxu0
    %v117 = vadd.f32 %v63, %v116
    %v118 = vpop.f32.mrb[0].mxu0
    %119 = vdwg.mxu0
    %vm120 = vcmp.gt.f32.partialorder %v114, 0.0
    %vm121 = vcmp.gt.f32.partialorder %v117, 0.0
    %v122 = vmul.f32 %v114, 0.01
    %v123 = vmul.f32 %v117, 0.01
    %v124 = vsel %vm120, %v114, %v122
    %v125 = vsel %vm121, %v117, %v123
    %v126 = vpack.c.bf16 %v125, %v124
    %v127 = vld [vmem:[#allocation5 + $0x8] sm:$0xf]
    %v128 = vld [vmem:[#allocation5 + $0xc] sm:$0xf]
    %v129 = vld [vmem:[#allocation5 + $0x10] sm:$0xf]
    %v130 = vld [vmem:[#allocation5 + $0x14] sm:$0xf]
    %v131 = vld [vmem:[#allocation5 + $0x18] sm:$0xf]
    %v132 = vld [vmem:[#allocation5 + $0x1c] sm:$0xf]
    %v133 = vld [vmem:[#allocation5 + $0x20] sm:$0xf]
    %v134 = vld [vmem:[#allocation5 + $0x24] sm:$0xf]
    %v135 = vld [vmem:[#allocation5 + $0x28] sm:$0xf]
    %v136 = vld [vmem:[#allocation5 + $0x2c] sm:$0xf]
    %v137 = vld [vmem:[#allocation5 + $0x30] sm:$0xf]
    %v138 = vld [vmem:[#allocation5 + $0x34] sm:$0xf]
    %v139 = vld [vmem:[#allocation5 + $0x38] sm:$0xf]
    %v140 = vld [vmem:[#allocation5 + $0x3c] sm:$0xf]
    %v141 = vld [vmem:[#allocation5 + $0x40] sm:$0xf]
    %v142 = vld [vmem:[#allocation5 + $0x44] sm:$0xf]
    %v159 = vunpack.c.l.b16 %v127
    %v160 = vunpack.c.l.b16 %v128
    %v161 = vunpack.c.l.b16 %v129
    %v162 = vunpack.c.l.b16 %v130
    %v163 = vunpack.c.l.b16 %v131
    %v164 = vunpack.c.l.b16 %v132
    %v165 = vunpack.c.l.b16 %v133
    %v166 = vunpack.c.l.b16 %v134
    %v167 = vunpack.c.l.b16 %v135
    %v168 = vunpack.c.l.b16 %v136
    %v169 = vunpack.c.l.b16 %v137
    %v170 = vunpack.c.l.b16 %v138
    %v171 = vunpack.c.l.b16 %v139
    %v172 = vunpack.c.l.b16 %v140
    %v173 = vunpack.c.l.b16 %v141
    %v174 = vunpack.c.l.b16 %v142
    %v175 = vpack.c.b16 %v160, %v159
    %v176 = vpack.c.b16 %v162, %v161
    %v177 = vpack.c.b16 %v164, %v163
    %v178 = vpack.c.b16 %v166, %v165
    %v179 = vpack.c.b16 %v168, %v167
    %v180 = vpack.c.b16 %v170, %v169
    %v181 = vpack.c.b16 %v172, %v171
    %v182 = vpack.c.b16 %v174, %v173
    %191 = vmatprep.subr.bf16.mxu0 0
    %192 = vmatpush1.bf16.msra.mxu0 %v175
    %193 = vmatprep.subr.bf16.mxu0 0
    %194 = vmatpush1.bf16.msra.mxu0 %v176
    %195 = vmatprep.subr.bf16.mxu0 0
    %196 = vmatpush1.bf16.msra.mxu0 %v177
    %197 = vmatprep.subr.bf16.mxu0 0
    %198 = vmatpush1.bf16.msra.mxu0 %v178
    %199 = vmatprep.subr.bf16.mxu0 0
    %200 = vmatpush1.bf16.msra.mxu0 %v179
    %201 = vmatprep.subr.bf16.mxu0 0
    %202 = vmatpush1.bf16.msra.mxu0 %v180
    %203 = vmatprep.subr.bf16.mxu0 0
    %204 = vmatpush1.bf16.msra.mxu0 %v181
    %205 = vmatprep.subr.bf16.mxu0 0
    %206 = vmatpush1.bf16.msra.mxu0 %v182
    %207 = vmatprep.subr.bf16.mxu0 0
    %208 = vmatpush1.bf16.msra.mxu0 0
    %209 = vmatprep.subr.bf16.mxu0 0
    %210 = vmatpush1.bf16.msra.mxu0 0
    %211 = vmatprep.subr.bf16.mxu0 0
    %212 = vmatpush1.bf16.msra.mxu0 0
    %213 = vmatprep.subr.bf16.mxu0 0
    %214 = vmatpush1.bf16.msra.mxu0 0
    %215 = vmatprep.subr.bf16.mxu0 0
    %216 = vmatpush1.bf16.msra.mxu0 0
    %217 = vmatprep.subr.bf16.mxu0 0
    %218 = vmatpush1.bf16.msra.mxu0 0
    %219 = vmatprep.subr.bf16.mxu0 0
    %220 = vmatpush1.bf16.msra.mxu0 0
    %221 = vmatprep.subr.bf16.mxu0 0
    %222 = vmatpush1.bf16.msra.mxu0 0
    %223 = vmatprep.mubr.bf16.mxu0 0
    %224 = vmatmul.mubr.bf16.gmra.mrb[0].mxu0 %v126
    %v225 = vpop.f32.mrb[0].mxu0
    %v226 = vadd.f32 0.0, %v225
    %v227 = vpop.f32.mrb[0].mxu0
    %v228 = vpop.f32.mrb[0].mxu0
    %v229 = vadd.f32 0.0, %v228
    %v230 = vpop.f32.mrb[0].mxu0
    %231 = vdwg.mxu0
    %vm232 = vcmp.gt.f32.partialorder %v226, 0.0
    %vm233 = vcmp.gt.f32.partialorder %v229, 0.0
    %v234 = vmul.f32 %v226, 0.01
    %v235 = vmul.f32 %v229, 0.01
    %v236 = vsel %vm232, %v226, %v234
    %v237 = vsel %vm233, %v229, %v235
    %v238 = vpack.c.bf16 %v237, %v236
    %v239 = vld [vmem:[#allocation5 + $0x48] sm:$0xf]
    %v240 = vld [vmem:[#allocation5 + $0x4c] sm:$0xf]
    %v241 = vld [vmem:[#allocation5 + $0x50] sm:$0xf]
    %v242 = vld [vmem:[#allocation5 + $0x54] sm:$0xf]
    %v243 = vld [vmem:[#allocation5 + $0x58] sm:$0xf]
    %v244 = vld [vmem:[#allocation5 + $0x5c] sm:$0xf]
    %v245 = vld [vmem:[#allocation5 + $0x60] sm:$0xf]
    %v246 = vld [vmem:[#allocation5 + $0x64] sm:$0xf]
    %v247 = vld [vmem:[#allocation5 + $0x68] sm:$0xf]
    %v248 = vld [vmem:[#allocation5 + $0x6c] sm:$0xf]
    %v249 = vld [vmem:[#allocation5 + $0x70] sm:$0xf]
    %v250 = vld [vmem:[#allocation5 + $0x74] sm:$0xf]
    %v251 = vld [vmem:[#allocation5 + $0x78] sm:$0xf]
    %v252 = vld [vmem:[#allocation5 + $0x7c] sm:$0xf]
    %v253 = vld [vmem:[#allocation5 + $0x80] sm:$0xf]
    %v254 = vld [vmem:[#allocation5 + $0x84] sm:$0xf]
    %v271 = vunpack.c.l.b16 %v239
    %v272 = vunpack.c.l.b16 %v240
    %v273 = vunpack.c.l.b16 %v241
    %v274 = vunpack.c.l.b16 %v242
    %v275 = vunpack.c.l.b16 %v243
    %v276 = vunpack.c.l.b16 %v244
    %v277 = vunpack.c.l.b16 %v245
    %v278 = vunpack.c.l.b16 %v246
    %v279 = vunpack.c.l.b16 %v247
    %v280 = vunpack.c.l.b16 %v248
    %v281 = vunpack.c.l.b16 %v249
    %v282 = vunpack.c.l.b16 %v250
    %v283 = vunpack.c.l.b16 %v251
    %v284 = vunpack.c.l.b16 %v252
    %v285 = vunpack.c.l.b16 %v253
    %v286 = vunpack.c.l.b16 %v254
    %v287 = vpack.c.b16 %v272, %v271
    %v288 = vpack.c.b16 %v274, %v273
    %v289 = vpack.c.b16 %v276, %v275
    %v290 = vpack.c.b16 %v278, %v277
    %v291 = vpack.c.b16 %v280, %v279
    %v292 = vpack.c.b16 %v282, %v281
    %v293 = vpack.c.b16 %v284, %v283
    %v294 = vpack.c.b16 %v286, %v285
    %303 = vmatprep.subr.bf16.mxu0 0
    %304 = vmatpush1.bf16.msra.mxu0 %v287
    %305 = vmatprep.subr.bf16.mxu0 0
    %306 = vmatpush1.bf16.msra.mxu0 %v288
    %307 = vmatprep.subr.bf16.mxu0 0
    %308 = vmatpush1.bf16.msra.mxu0 %v289
    %309 = vmatprep.subr.bf16.mxu0 0
    %310 = vmatpush1.bf16.msra.mxu0 %v290
    %311 = vmatprep.subr.bf16.mxu0 0
    %312 = vmatpush1.bf16.msra.mxu0 %v291
    %313 = vmatprep.subr.bf16.mxu0 0
    %314 = vmatpush1.bf16.msra.mxu0 %v292
    %315 = vmatprep.subr.bf16.mxu0 0
    %316 = vmatpush1.bf16.msra.mxu0 %v293
    %317 = vmatprep.subr.bf16.mxu0 0
    %318 = vmatpush1.bf16.msra.mxu0 %v294
    %319 = vmatprep.subr.bf16.mxu0 0
    %320 = vmatpush1.bf16.msra.mxu0 0
    %321 = vmatprep.subr.bf16.mxu0 0
    %322 = vmatpush1.bf16.msra.mxu0 0
    %323 = vmatprep.subr.bf16.mxu0 0
    %324 = vmatpush1.bf16.msra.mxu0 0
    %325 = vmatprep.subr.bf16.mxu0 0
    %326 = vmatpush1.bf16.msra.mxu0 0
    %327 = vmatprep.subr.bf16.mxu0 0
    %328 = vmatpush1.bf16.msra.mxu0 0
    %329 = vmatprep.subr.bf16.mxu0 0
    %330 = vmatpush1.bf16.msra.mxu0 0
    %331 = vmatprep.subr.bf16.mxu0 0
    %332 = vmatpush1.bf16.msra.mxu0 0
    %333 = vmatprep.subr.bf16.mxu0 0
    %334 = vmatpush1.bf16.msra.mxu0 0
    %335 = vmatprep.mubr.bf16.mxu0 0
    %336 = vmatmul.mubr.bf16.gmra.mrb[0].mxu0 %v238
    %v337 = vpop.f32.mrb[0].mxu0
    %v338 = vadd.f32 0.0, %v337
    %v339 = vpop.f32.mrb[0].mxu0
    %v340 = vpop.f32.mrb[0].mxu0
    %v341 = vadd.f32 0.0, %v340
    %v342 = vpop.f32.mrb[0].mxu0
    %343 = vdwg.mxu0
    %vm344 = vcmp.gt.f32.partialorder %v338, 0.0
    %vm345 = vcmp.gt.f32.partialorder %v341, 0.0
    %v346 = vmul.f32 %v338, 0.01
    %v347 = vmul.f32 %v341, 0.01
    %v348 = vsel %vm344, %v338, %v346
    %v349 = vsel %vm345, %v341, %v347
    %v350 = vpack.c.bf16 %v349, %v348
    %v351 = vld [vmem:[#allocation5 + $0x88] sm:$0xf]
    %v352 = vld [vmem:[#allocation5 + $0x8c] sm:$0xf]
    %v353 = vld [vmem:[#allocation5 + $0x90] sm:$0xf]
    %v354 = vld [vmem:[#allocation5 + $0x94] sm:$0xf]
    %v355 = vld [vmem:[#allocation5 + $0x98] sm:$0xf]
    %v356 = vld [vmem:[#allocation5 + $0x9c] sm:$0xf]
    %v357 = vld [vmem:[#allocation5 + $0xa0] sm:$0xf]
    %v358 = vld [vmem:[#allocation5 + $0xa4] sm:$0xf]
    %v359 = vld [vmem:[#allocation5 + $0xa8] sm:$0xf]
    %v360 = vld [vmem:[#allocation5 + $0xac] sm:$0xf]
    %v361 = vld [vmem:[#allocation5 + $0xb0] sm:$0xf]
    %v362 = vld [vmem:[#allocation5 + $0xb4] sm:$0xf]
    %v363 = vld [vmem:[#allocation5 + $0xb8] sm:$0xf]
    %v364 = vld [vmem:[#allocation5 + $0xbc] sm:$0xf]
    %v365 = vld [vmem:[#allocation5 + $0xc0] sm:$0xf]
    %v366 = vld [vmem:[#allocation5 + $0xc4] sm:$0xf]
    %v383 = vunpack.c.l.b16 %v351
    %v384 = vunpack.c.l.b16 %v352
    %v385 = vunpack.c.l.b16 %v353
    %v386 = vunpack.c.l.b16 %v354
    %v387 = vunpack.c.l.b16 %v355
    %v388 = vunpack.c.l.b16 %v356
    %v389 = vunpack.c.l.b16 %v357
    %v390 = vunpack.c.l.b16 %v358
    %v391 = vunpack.c.l.b16 %v359
    %v392 = vunpack.c.l.b16 %v360
    %v393 = vunpack.c.l.b16 %v361
    %v394 = vunpack.c.l.b16 %v362
    %v395 = vunpack.c.l.b16 %v363
    %v396 = vunpack.c.l.b16 %v364
    %v397 = vunpack.c.l.b16 %v365
    %v398 = vunpack.c.l.b16 %v366
    %v399 = vpack.c.b16 %v384, %v383
    %v400 = vpack.c.b16 %v386, %v385
    %v401 = vpack.c.b16 %v388, %v387
    %v402 = vpack.c.b16 %v390, %v389
    %v403 = vpack.c.b16 %v392, %v391
    %v404 = vpack.c.b16 %v394, %v393
    %v405 = vpack.c.b16 %v396, %v395
    %v406 = vpack.c.b16 %v398, %v397
    %415 = vmatprep.subr.bf16.mxu0 0
    %416 = vmatpush1.bf16.msra.mxu0 %v399
    %417 = vmatprep.subr.bf16.mxu0 0
    %418 = vmatpush1.bf16.msra.mxu0 %v400
    %419 = vmatprep.subr.bf16.mxu0 0
    %420 = vmatpush1.bf16.msra.mxu0 %v401
    %421 = vmatprep.subr.bf16.mxu0 0
    %422 = vmatpush1.bf16.msra.mxu0 %v402
    %423 = vmatprep.subr.bf16.mxu0 0
    %424 = vmatpush1.bf16.msra.mxu0 %v403
    %425 = vmatprep.subr.bf16.mxu0 0
    %426 = vmatpush1.bf16.msra.mxu0 %v404
    %427 = vmatprep.subr.bf16.mxu0 0
    %428 = vmatpush1.bf16.msra.mxu0 %v405
    %429 = vmatprep.subr.bf16.mxu0 0
    %430 = vmatpush1.bf16.msra.mxu0 %v406
    %431 = vmatprep.subr.bf16.mxu0 0
    %432 = vmatpush1.bf16.msra.mxu0 0
    %433 = vmatprep.subr.bf16.mxu0 0
    %434 = vmatpush1.bf16.msra.mxu0 0
    %435 = vmatprep.subr.bf16.mxu0 0
    %436 = vmatpush1.bf16.msra.mxu0 0
    %437 = vmatprep.subr.bf16.mxu0 0
    %438 = vmatpush1.bf16.msra.mxu0 0
    %439 = vmatprep.subr.bf16.mxu0 0
    %440 = vmatpush1.bf16.msra.mxu0 0
    %441 = vmatprep.subr.bf16.mxu0 0
    %442 = vmatpush1.bf16.msra.mxu0 0
    %443 = vmatprep.subr.bf16.mxu0 0
    %444 = vmatpush1.bf16.msra.mxu0 0
    %445 = vmatprep.subr.bf16.mxu0 0
    %446 = vmatpush1.bf16.msra.mxu0 0
    %447 = vmatprep.mubr.bf16.mxu0 0
    %448 = vmatmul.mubr.bf16.gmra.mrb[0].mxu0 %v350
    %v449 = vpop.f32.mrb[0].mxu0
    %v450 = vadd.f32 0.0, %v449
    %v451 = vpop.f32.mrb[0].mxu0
    %v452 = vpop.f32.mrb[0].mxu0
    %v453 = vadd.f32 0.0, %v452
    %v454 = vpop.f32.mrb[0].mxu0
    %455 = vdwg.mxu0
    %456 = vst [vmem:[#allocation8] sm:$0xff] %v450
    %457 = vst [vmem:[#allocation8 + $0x8] sm:$0xff] %v453
    // Predicated region
    $region26: #{tpu_custom_call.1} parent=1 // pred_check
      _
    $region27: #{tpu_custom_call.1} parent=1 // pred_check_branch
      %459 = sbr.rel (0) target = $region29
    $region28: #{tpu_custom_call.1} parent=1 // pred_region
      %s461 = ssub.s32 256, 256
      %462 = vsyncadd [#allocation4], %s461
      %s463 = sshll.u32 [#allocation8], 4
      %s464 = int_to_ptr.vmem [resolvable:$true] %s463
      %469 = dma.vmem_to_hbm [thread:$0]  %s464, 256, %s3, [#allocation4], 128, 128, 8
    $region29: #{tpu_custom_call.1} parent=1 // pred_fallthru
      _
    // Predicated region
    $region30: #{tpu_custom_call.1} parent=1 // pred_check
      _
    $region31: #{tpu_custom_call.1} parent=1 // pred_check_branch
      %471 = sbr.rel (0) target = $region33
    $region32: #{tpu_custom_call.1} parent=1 // pred_region
      %472 = dma.done [#allocation4], 256
    $region33: #{tpu_custom_call.1} parent=1 // pred_fallthru
      _
    %473 = vsyncpa [#allocation3], 1
    %474 = vsyncpa [#allocation6], 1
    %475 = vsyncpa [#allocation4], 1

</llo_original>
